<compile_context>
chip_gen: v6e
topology: v6e:2x2x1
jax: 0.10.0
libtpu: 0.0.40
codegen_flags: <defaults>
</compile_context>

<pallas_src>
import math
from functools import partial

import jax
import jax.numpy as jnp
from jax import lax
from jax.experimental import pallas as pl
from jax.experimental.pallas import tpu as pltpu


def _round_up(x, m):
    return ((x + m - 1) // m) * m


def _choose_tb(batch, n_q_tiles):
    """Largest divisor of `batch` (<= 8) that still leaves >= 2 parallel grid
    blocks so both TensorCores get work on v7x (no effect on v5e/v6e)."""
    divisors = [t for t in range(1, min(batch, 8) + 1) if batch % t == 0]
    for t in reversed(divisors):
        if (batch // t) * n_q_tiles >= 2:
            return t
    return divisors[-1]


def _attn_kernel(lastk_ref, vl_ref, q_ref, k_ref, v_ref, o_ref, m_sc, acc_sc,
                 *, scale, tk, dv):
    # lastk_ref: (n_batch_blocks,) int32 in SMEM (scalar prefetch)
    # vl_ref:    (TB, 1, 128) int32 (valid_lens broadcast across lanes)
    # q_ref: (TB, TQ, D)   k_ref: (TB, TK, D)   v_ref: (TB, TK, Dv_pad)
    # o_ref: (TB, TQ, Dv_pad)
    # m_sc: (TB, TQ, 1) f32    acc_sc: (TB, TQ, Dv_pad) f32
    # Lane `dv` of v_ref is all-ones, so the PV matmul also produces the
    # softmax denominator (sum of p) in acc_sc[..., dv] for free on the MXU.
    bi = pl.program_id(0)
    ki = pl.program_id(2)
    nk = pl.num_programs(2)

    @pl.when(ki == 0)
    def _init():
        m_sc[...] = jnp.full_like(m_sc, -jnp.inf)
        acc_sc[...] = jnp.zeros_like(acc_sc)

    # Tiles past the last valid K tile of this batch block are (a) never
    # re-fetched (index_map is clamped, so the block index repeats) and
    # (b) skipped here; their softmax contribution is exactly zero.
    @pl.when(ki <= lastk_ref[bi])
    def _compute():
        q = q_ref[...]
        k = k_ref[...]
        v = v_ref[...]
        vl = vl_ref[...][:, :, :1]                       # (TB, 1, 1) int32

        # scores: batched MXU matmul in input dtype, f32 accumulation
        s = jnp.einsum("btd,bkd->btk", q, k,
                       preferred_element_type=jnp.float32) * scale

        # length mask (also covers zero-padded keys since valid_len <= K)
        col = ki * tk + lax.broadcasted_iota(jnp.int32, s.shape, 2)
        s = jnp.where(col < vl, s, jnp.float32(-1000000.0))   # d2l mask value

        # online softmax update (whole-ref; denominator rides in acc col dv)
        m_prev = m_sc[...]
        m_new = jnp.maximum(m_prev, jnp.max(s, axis=-1, keepdims=True))
        alpha = jnp.exp(m_prev - m_new)
        p = jnp.exp(s - m_new)
        acc_sc[...] = alpha * acc_sc[...] + jnp.einsum(
            "btk,bkv->btv", p.astype(v.dtype), v,
            preferred_element_type=jnp.float32)
        m_sc[...] = m_new

    @pl.when(ki == nk - 1)
    def _finalize():
        # TODO(synk): nn.Dropout on the attention weights is identity in eval
        # mode; training-mode dropout is not implemented.
        acc = acc_sc[...]
        denom = acc[:, :, dv:dv + 1]          # fused softmax denominator
        o_ref[...] = (acc / denom).astype(o_ref.dtype)   # exact (runs once)


def dot_product_attention(queries, keys, values, valid_lens=None):
    """queries (B,Q,D), keys (B,K,D), values (B,K,Dv), valid_lens (B,) int."""
    B, Q, D = queries.shape
    _, K, _ = keys.shape
    _, _, Dv = values.shape
    out_dtype = queries.dtype
    scale = 1.0 / math.sqrt(D)               # scale uses the true head dim

    if valid_lens is None:
        valid_lens = jnp.full((B,), K, dtype=jnp.int32)
    # TODO(synk): per-query (B, Q)-shaped valid_lens (also accepted by the d2l
    # reference) are not supported; only per-batch (B,) lengths.
    # TODO(synk): valid_len == 0 rows normalize over the first K tile only;
    # the reference normalizes uniformly over all K (differs only when K > TK).

    qk_itemsize = jnp.dtype(queries.dtype).itemsize
    v_itemsize = jnp.dtype(values.dtype).itemsize
    out_itemsize = jnp.dtype(out_dtype).itemsize
    q_align = 16 if qk_itemsize < 4 else 8            # bf16 packs (16,128)

    Q_pad = _round_up(Q, q_align)
    K_pad = _round_up(K, 128)
    # One extra lane of ones in V fuses the softmax row-sum into the PV matmul.
    Dv_pad = _round_up(Dv + 1, 128)

    tq_candidates = [t for t in (256, 128, 64, 32, 16, 8)
                     if t % q_align == 0 and Q_pad % t == 0]
    tk_candidates = [t for t in (512, 256, 128) if K_pad % t == 0]

    TB = _choose_tb(B, Q_pad // tq_candidates[0])
    n_b = B // TB

    # --- VMEM-budgeted tile selection (re-derived per chip; v7x has 64 MiB) --
    try:
        vmem_cap = int(getattr(pltpu.get_tpu_info(), "vmem_capacity_bytes",
                               64 * 1024 * 1024))
    except Exception:
        vmem_cap = 64 * 1024 * 1024
    budget = int(vmem_cap * 0.7)

    def vmem_need(tb, tq, tk):
        qk_in = 2 * tb * (tq + tk) * D * qk_itemsize          # double-buffered
        v_in = 2 * tb * tk * Dv_pad * v_itemsize
        o_out = 2 * tb * tq * Dv_pad * out_itemsize
        scratch = tb * tq * (Dv_pad + 1) * 4                  # acc + m (f32)
        return qk_in + v_in + o_out + scratch + (1 << 20)     # misc margin

    TQ, TK = tq_candidates[-1], tk_candidates[-1]
    found = False
    for tq in tq_candidates:          # prefer large TQ: halves K/V re-reads
        for tk in tk_candidates:
            if vmem_need(TB, tq, tk) <= budget:
                TQ, TK = tq, tk
                found = True
                break
        if found:
            break

    n_k = K_pad // TK
    grid = (n_b, Q_pad // TQ, n_k)

    # --- padded operands (D is left unpadded in HBM; Mosaic pads in-register)
    q_p = jnp.pad(queries, ((0, 0), (0, Q_pad - Q), (0, 0)))
    k_p = jnp.pad(keys, ((0, 0), (0, K_pad - K), (0, 0)))
    v_p = jnp.pad(values, ((0, 0), (0, K_pad - K), (0, Dv_pad - Dv)))
    v_p = v_p.at[:, :, Dv].set(1.0)               # ones lane -> fused denom

    vl = valid_lens.astype(jnp.int32)
    vl_lanes = jnp.broadcast_to(vl[:, None, None], (B, 1, 128)).astype(jnp.int32)

    # last needed K tile per batch block: later tiles are never DMA'd
    lastk = jnp.clip(
        (jnp.max(vl.reshape(n_b, TB), axis=1) + TK - 1) // TK - 1, 0, n_k - 1
    ).astype(jnp.int32)

    def kv_index_map(b, q, k, lastk_ref):
        # Clamp to the last needed K tile: a repeated block index means Pallas
        # skips the HBM->VMEM DMA for fully-masked K/V tiles entirely.
        return (b, jnp.minimum(k, lastk_ref[b]), 0)

    grid_spec = pltpu.PrefetchScalarGridSpec(
        num_scalar_prefetch=1,
        grid=grid,
        in_specs=[
            pl.BlockSpec((TB, 1, 128), lambda b, q, k, lk: (b, 0, 0)),   # vlens
            pl.BlockSpec((TB, TQ, D), lambda b, q, k, lk: (b, q, 0)),    # Q
            pl.BlockSpec((TB, TK, D), kv_index_map),                     # K
            pl.BlockSpec((TB, TK, Dv_pad), kv_index_map),                # V
        ],
        out_specs=pl.BlockSpec((TB, TQ, Dv_pad), lambda b, q, k, lk: (b, q, 0)),
        scratch_shapes=[
            pltpu.VMEM((TB, TQ, 1), jnp.float32),        # running max m
            pltpu.VMEM((TB, TQ, Dv_pad), jnp.float32),   # acc (incl. denom)
        ],
    )

    cost = pl.CostEstimate(
        flops=2 * B * Q_pad * K_pad * (D + Dv_pad),
        transcendentals=B * Q_pad * K_pad,
        bytes_accessed=(q_p.size * qk_itemsize + k_p.size * qk_itemsize
                        + v_p.size * v_itemsize
                        + B * Q_pad * Dv_pad * out_itemsize),
    )

    need = vmem_need(TB, TQ, TK)
    vmem_limit = int(min(0.9 * vmem_cap, max(need + (4 << 20), 32 << 20)))

    out = pl.pallas_call(
        partial(_attn_kernel, scale=scale, tk=TK, dv=Dv),
        out_shape=jax.ShapeDtypeStruct((B, Q_pad, Dv_pad), out_dtype),
        grid_spec=grid_spec,
        compiler_params=pltpu.CompilerParams(
            dimension_semantics=("parallel", "parallel", "arbitrary"),
            vmem_limit_bytes=vmem_limit,
        ),
        cost_estimate=cost,
    )(lastk, vl_lanes, q_p, k_p, v_p)

    return out[:, :Q, :Dv]


def _reference(queries, keys, values, valid_lens):
    d = queries.shape[-1]
    q32 = queries.astype(jnp.float32)
    k32 = keys.astype(jnp.float32)
    v32 = values.astype(jnp.float32)
    scores = jnp.einsum("bqd,bkd->bqk", q32, k32) / math.sqrt(d)
    col = jnp.arange(scores.shape[-1])[None, None, :]
    mask = col < valid_lens[:, None, None]
    scores = jnp.where(mask, scores, -1000000.0)
    w = jax.nn.softmax(scores, axis=-1)
    return jnp.einsum("bqk,bkv->bqv", w, v32)


if __name__ == "__main__":
    key = jax.random.PRNGKey(0)
    k1, k2, k3, k4, k5 = jax.random.split(key, 5)

    # --- case 1: exact shapes of the original d2l / PyTorch example ---------
    B, Q, D, K, Dv = 2, 1, 2, 10, 4
    queries = jax.random.normal(k1, (B, Q, D), dtype=jnp.float32)
    keys = jax.random.normal(k2, (B, K, D), dtype=jnp.float32)
    values = jnp.tile(jnp.arange(40, dtype=jnp.float32).reshape(1, K, Dv),
                      (B, 1, 1))
    valid_lens = jnp.array([2, 6], dtype=jnp.int32)

    out = jax.block_until_ready(
        dot_product_attention(queries, keys, values, valid_lens))
    ref = _reference(queries, keys, values, valid_lens)
    assert out.shape == (B, Q, Dv)
    assert jnp.allclose(out, ref, atol=2e-3, rtol=2e-3), (out, ref)

    # --- case 2: multiple K tiles, DMA-skipped masked tiles, f32 ------------
    B2, Q2, D2, K2, Dv2 = 4, 16, 32, 640, 24
    q2 = jax.random.normal(k3, (B2, Q2, D2), dtype=jnp.float32)
    kk2 = jax.random.normal(k4, (B2, K2, D2), dtype=jnp.float32)
    vv2 = jax.random.normal(k5, (B2, K2, Dv2), dtype=jnp.float32)
    vl2 = jnp.array([3, 640, 200, 100], dtype=jnp.int32)
    out2 = jax.block_until_ready(dot_product_attention(q2, kk2, vv2, vl2))
    ref2 = _reference(q2, kk2, vv2, vl2)
    assert out2.shape == (B2, Q2, Dv2)
    assert jnp.allclose(out2, ref2, atol=2e-3, rtol=2e-3), (
        float(jnp.max(jnp.abs(out2 - ref2))))

    # --- case 3: bf16 inputs; every batch block skips trailing K tiles ------
    vl3 = jnp.array([3, 130, 200, 100], dtype=jnp.int32)
    q3, k3b, v3 = (x.astype(jnp.bfloat16) for x in (q2, kk2, vv2))
    out3 = jax.block_until_ready(dot_product_attention(q3, k3b, v3, vl3))
    ref3 = _reference(q3, k3b, v3, vl3)
    assert out3.dtype == jnp.bfloat16
    assert jnp.allclose(out3.astype(jnp.float32), ref3, atol=5e-2, rtol=5e-2), (
        float(jnp.max(jnp.abs(out3.astype(jnp.float32) - ref3))))

    print("KERNEL_OK")
</pallas_src>

<mosaic_0001>
module attributes {stable_mosaic.version = 11 : i64} {
  func.func @_attn_kernel(%arg0: i32, %arg1: i32, %arg2: i32, %arg3: memref<2xi32, #tpu.memory_space<smem>>, %arg4: memref<1x1x128xi32, #tpu.memory_space<vmem>>, %arg5: memref<1x8x2xf32, #tpu.memory_space<vmem>>, %arg6: memref<1x128x2xf32, #tpu.memory_space<vmem>>, %arg7: memref<1x128x128xf32, #tpu.memory_space<vmem>>, %arg8: memref<1x8x128xf32, #tpu.memory_space<vmem>>, %arg9: memref<1x8x1xf32, #tpu.memory_space<vmem>>, %arg10: memref<1x8x128xf32, #tpu.memory_space<vmem>>) attributes {dimension_semantics = [#tpu.dimension_semantics<parallel>, #tpu.dimension_semantics<parallel>, #tpu.dimension_semantics<arbitrary>], iteration_bounds = array<i64: 2, 1, 1>, scalar_prefetch = 1 : i64, scratch_operands = 2 : i64, tpu.core_type = #tpu.core_type<tc>, window_params = [{transform_indices = @transform_0, window_bounds = array<i64: 1, 1, 128>}, {transform_indices = @transform_1, window_bounds = array<i64: 1, 8, 2>}, {transform_indices = @transform_2, window_bounds = array<i64: 1, 128, 2>}, {transform_indices = @transform_3, window_bounds = array<i64: 1, 128, 128>}, {transform_indices = @transform_4, window_bounds = array<i64: 1, 8, 128>}]} {
    %c0_i32 = arith.constant 0 : i32
    %0 = arith.cmpi eq, %arg2, %c0_i32 : i32
    %1 = arith.extui %0 : i1 to i32
    %c0_i32_0 = arith.constant 0 : i32
    %2 = arith.cmpi ne, %1, %c0_i32_0 : i32
    scf.if %2 {
      %cst = arith.constant 0xFF800000 : f32
      %11 = vector.broadcast %cst : f32 to vector<1x8x1xf32>
      %c0 = arith.constant 0 : index
      %c0_4 = arith.constant 0 : index
      %c0_5 = arith.constant 0 : index
      %12 = vector.load %arg9[%c0, %c0_4, %c0_5] : memref<1x8x1xf32, #tpu.memory_space<vmem>>, vector<1x8x1xf32>
      tpu.vector_store %arg9[%c0, %c0_4, %c0_5], %11 {strides = array<i32>} : memref<1x8x1xf32, #tpu.memory_space<vmem>>, vector<1x8x1xf32>,
      %cst_6 = arith.constant 0.000000e+00 : f32
      %13 = vector.broadcast %cst_6 : f32 to vector<1x8x128xf32>
      %c0_7 = arith.constant 0 : index
      %c0_8 = arith.constant 0 : index
      %c0_9 = arith.constant 0 : index
      %14 = vector.load %arg10[%c0_7, %c0_8, %c0_9] : memref<1x8x128xf32, #tpu.memory_space<vmem>>, vector<1x8x128xf32>
      tpu.vector_store %arg10[%c0_7, %c0_8, %c0_9], %13 {strides = array<i32>} : memref<1x8x128xf32, #tpu.memory_space<vmem>>, vector<1x8x128xf32>,
    } else {
    }
    %3 = arith.index_cast %arg0 : i32 to index
    %4 = memref.load %arg3[%3] : memref<2xi32, #tpu.memory_space<smem>>
    %5 = arith.cmpi sle, %arg2, %4 : i32
    %6 = arith.extui %5 : i1 to i32
    %c0_i32_1 = arith.constant 0 : i32
    %7 = arith.cmpi ne, %6, %c0_i32_1 : i32
    scf.if %7 {
      %c0 = arith.constant 0 : index
      %c0_4 = arith.constant 0 : index
      %c0_5 = arith.constant 0 : index
      %11 = vector.load %arg5[%c0, %c0_4, %c0_5] : memref<1x8x2xf32, #tpu.memory_space<vmem>>, vector<1x8x2xf32>
      %c0_6 = arith.constant 0 : index
      %c0_7 = arith.constant 0 : index
      %c0_8 = arith.constant 0 : index
      %12 = vector.load %arg6[%c0_6, %c0_7, %c0_8] : memref<1x128x2xf32, #tpu.memory_space<vmem>>, vector<1x128x2xf32>
      %c0_9 = arith.constant 0 : index
      %c0_10 = arith.constant 0 : index
      %c0_11 = arith.constant 0 : index
      %13 = vector.load %arg7[%c0_9, %c0_10, %c0_11] : memref<1x128x128xf32, #tpu.memory_space<vmem>>, vector<1x128x128xf32>
      %c0_12 = arith.constant 0 : index
      %c0_13 = arith.constant 0 : index
      %c0_14 = arith.constant 0 : index
      %14 = vector.load %arg4[%c0_12, %c0_13, %c0_14] : memref<1x1x128xi32, #tpu.memory_space<vmem>>, vector<1x1x128xi32>
      %15 = vector.extract_strided_slice %14 {offsets = [0, 0, 0], sizes = [1, 1, 1], strides = [1, 1, 1]} : vector<1x1x128xi32> to vector<1x1x1xi32>
      "tpu.trace_start"() <{level = 10 : i32, message = "btd,bkd->btk"}> : () -> ()
      %cst = arith.constant dense<0.000000e+00> : vector<1x8x128xf32>
      %16 = tpu.matmul %11, %12, %cst {dimension_numbers = #tpu.dot_dimension_numbers<[2], [2], [1], [1], [0, 0, 0, 1, 1, 1], [0], [0]>} : vector<1x8x2xf32>, vector<1x128x2xf32>, vector<1x8x128xf32> -> vector<1x8x128xf32>
      "tpu.trace_stop"() : () -> ()
      %cst_15 = arith.constant 0.707106769 : f32
      %17 = vector.broadcast %cst_15 : f32 to vector<1x8x128xf32>
      %18 = arith.mulf %16, %17 : vector<1x8x128xf32>
      %c128_i32 = arith.constant 128 : i32
      %19 = arith.muli %arg2, %c128_i32 : i32
      %20 = tpu.iota {dimensions = array<i32: 2>} : vector<1x8x128xi32>
      %21 = vector.broadcast %19 : i32 to vector<1x8x128xi32>
      %22 = arith.addi %21, %20 : vector<1x8x128xi32>
      %23 = vector.broadcast %15 : vector<1x1x1xi32> to vector<1x8x128xi32>
      %24 = arith.cmpi slt, %22, %23 : vector<1x8x128xi32>
      %cst_16 = arith.constant -1.000000e+06 : f32
      %25 = vector.broadcast %cst_16 : f32 to vector<1x8x128xf32>
      %26 = arith.select %24, %18, %25 : vector<1x8x128xi1>, vector<1x8x128xf32>
      %c0_17 = arith.constant 0 : index
      %c0_18 = arith.constant 0 : index
      %c0_19 = arith.constant 0 : index
      %27 = vector.load %arg9[%c0_17, %c0_18, %c0_19] : memref<1x8x1xf32, #tpu.memory_space<vmem>>, vector<1x8x1xf32>
      %cst_20 = arith.constant dense<0xFF800000> : vector<1x8xf32>
      %28 = vector.multi_reduction <maximumf>, %26, %cst_20 [2] : vector<1x8x128xf32> to vector<1x8xf32>
      %29 = vector.shape_cast %28 : vector<1x8xf32> to vector<1x8x1xf32>
      %30 = arith.maximumf %27, %29 : vector<1x8x1xf32>
      %31 = arith.subf %27, %30 : vector<1x8x1xf32>
      %32 = math.exp %31 : vector<1x8x1xf32>
      %33 = vector.broadcast %30 : vector<1x8x1xf32> to vector<1x8x128xf32>
      %34 = arith.subf %26, %33 : vector<1x8x128xf32>
      %35 = math.exp %34 : vector<1x8x128xf32>
      %c0_21 = arith.constant 0 : index
      %c0_22 = arith.constant 0 : index
      %c0_23 = arith.constant 0 : index
      %36 = vector.load %arg10[%c0_21, %c0_22, %c0_23] : memref<1x8x128xf32, #tpu.memory_space<vmem>>, vector<1x8x128xf32>
      %37 = vector.broadcast %32 : vector<1x8x1xf32> to vector<1x8x128xf32>
      %38 = arith.mulf %37, %36 : vector<1x8x128xf32>
      "tpu.trace_start"() <{level = 10 : i32, message = "btk,bkv->btv"}> : () -> ()
      %cst_24 = arith.constant dense<0.000000e+00> : vector<1x8x128xf32>
      %39 = tpu.matmul %35, %13, %cst_24 {dimension_numbers = #tpu.dot_dimension_numbers<[2], [1], [1], [2], [0, 0, 0, 1, 1, 2], [0], [0]>} : vector<1x8x128xf32>, vector<1x128x128xf32>, vector<1x8x128xf32> -> vector<1x8x128xf32>
      "tpu.trace_stop"() : () -> ()
      %40 = arith.addf %38, %39 : vector<1x8x128xf32>
      %c0_25 = arith.constant 0 : index
      %c0_26 = arith.constant 0 : index
      %c0_27 = arith.constant 0 : index
      %41 = vector.load %arg10[%c0_25, %c0_26, %c0_27] : memref<1x8x128xf32, #tpu.memory_space<vmem>>, vector<1x8x128xf32>
      tpu.vector_store %arg10[%c0_25, %c0_26, %c0_27], %40 {strides = array<i32>} : memref<1x8x128xf32, #tpu.memory_space<vmem>>, vector<1x8x128xf32>,
      %c0_28 = arith.constant 0 : index
      %c0_29 = arith.constant 0 : index
      %c0_30 = arith.constant 0 : index
      %42 = vector.load %arg9[%c0_28, %c0_29, %c0_30] : memref<1x8x1xf32, #tpu.memory_space<vmem>>, vector<1x8x1xf32>
      tpu.vector_store %arg9[%c0_28, %c0_29, %c0_30], %30 {strides = array<i32>} : memref<1x8x1xf32, #tpu.memory_space<vmem>>, vector<1x8x1xf32>,
    } else {
    }
    %c0_i32_2 = arith.constant 0 : i32
    %8 = arith.cmpi eq, %arg2, %c0_i32_2 : i32
    %9 = arith.extui %8 : i1 to i32
    %c0_i32_3 = arith.constant 0 : i32
    %10 = arith.cmpi ne, %9, %c0_i32_3 : i32
    scf.if %10 {
      %c0 = arith.constant 0 : index
      %c0_4 = arith.constant 0 : index
      %c0_5 = arith.constant 0 : index
      %11 = vector.load %arg10[%c0, %c0_4, %c0_5] : memref<1x8x128xf32, #tpu.memory_space<vmem>>, vector<1x8x128xf32>
      %12 = vector.extract_strided_slice %11 {offsets = [0, 0, 4], sizes = [1, 8, 1], strides = [1, 1, 1]} : vector<1x8x128xf32> to vector<1x8x1xf32>
      %13 = vector.broadcast %12 : vector<1x8x1xf32> to vector<1x8x128xf32>
      %14 = arith.divf %11, %13 : vector<1x8x128xf32>
      %c0_6 = arith.constant 0 : index
      %c0_7 = arith.constant 0 : index
      %c0_8 = arith.constant 0 : index
      %15 = vector.load %arg8[%c0_6, %c0_7, %c0_8] : memref<1x8x128xf32, #tpu.memory_space<vmem>>, vector<1x8x128xf32>
      tpu.vector_store %arg8[%c0_6, %c0_7, %c0_8], %14 {strides = array<i32>} : memref<1x8x128xf32, #tpu.memory_space<vmem>>, vector<1x8x128xf32>,
    } else {
    }
    return
  }
  func.func @transform_0(%arg0: i32, %arg1: i32, %arg2: i32, %arg3: memref<2xi32, #tpu.memory_space<smem>>) -> (i32, i32, i32) {
    %c0_i32 = arith.constant 0 : i32
    %c0_i32_0 = arith.constant 0 : i32
    %c0_i32_1 = arith.constant 0 : i32
    return %arg0, %c0_i32, %c0_i32_0 : i32, i32, i32
  }
  func.func @transform_1(%arg0: i32, %arg1: i32, %arg2: i32, %arg3: memref<2xi32, #tpu.memory_space<smem>>) -> (i32, i32, i32) {
    %c0_i32 = arith.constant 0 : i32
    %c0_i32_0 = arith.constant 0 : i32
    return %arg0, %arg1, %c0_i32 : i32, i32, i32
  }
  func.func @transform_2(%arg0: i32, %arg1: i32, %arg2: i32, %arg3: memref<2xi32, #tpu.memory_space<smem>>) -> (i32, i32, i32) {
    %0 = arith.index_cast %arg0 : i32 to index
    %1 = memref.load %arg3[%0] : memref<2xi32, #tpu.memory_space<smem>>
    %2 = arith.minsi %arg2, %1 : i32
    %c0_i32 = arith.constant 0 : i32
    %c0_i32_0 = arith.constant 0 : i32
    return %arg0, %2, %c0_i32 : i32, i32, i32
  }
  func.func @transform_3(%arg0: i32, %arg1: i32, %arg2: i32, %arg3: memref<2xi32, #tpu.memory_space<smem>>) -> (i32, i32, i32) {
    %0 = arith.index_cast %arg0 : i32 to index
    %1 = memref.load %arg3[%0] : memref<2xi32, #tpu.memory_space<smem>>
    %2 = arith.minsi %arg2, %1 : i32
    %c0_i32 = arith.constant 0 : i32
    %c0_i32_0 = arith.constant 0 : i32
    return %arg0, %2, %c0_i32 : i32, i32, i32
  }
  func.func @transform_4(%arg0: i32, %arg1: i32, %arg2: i32, %arg3: memref<2xi32, #tpu.memory_space<smem>>) -> (i32, i32, i32) {
    %c0_i32 = arith.constant 0 : i32
    %c0_i32_0 = arith.constant 0 : i32
    return %arg0, %arg1, %c0_i32 : i32, i32, i32
  }
}

</mosaic_0001>

<llo_original>
// kernel: tpu_custom_call.1
$region0: #{tpu_custom_call.1}
  #allocation0 [shape = 'u32[]', space=smem, size = 0x4, offset = 0x4, fixed_abs, tag = 'smem constant byte address 0x4 - core index']
  #allocation1 [shape = 'u32[144,128]{1,0:T(1,128)}', space=vmem, size = 0x12000, scoped, tag = 'internal scratch']
  #allocation2 [shape = 'f32[1,8,1]{2,1,0:T(8,128)}', space=vmem, size = 0x1000, scoped, tag = 'scratch operand']
  #allocation3 [shape = 'f32[1,8,128]{2,1,0:T(8,128)}', space=vmem, size = 0x1000, scoped, tag = 'scratch operand']
  #allocation4 [shape = 's32[1]{0}', space=sflag, size = 0x4, scoped, tag = 'scoped memory for tpu_custom_call.1']
  #allocation5 [shape = 'u8[512]{0}', space=smem, size = 0x200, scoped, tag = 'prefetched SMEM operand 0']
  %s0 = inlined_call_operand.vmem [shape: s32[2], index: 0, kind: input, shape index: {}]
  %s1 = inlined_call_operand.vmem [shape: s32[2,1,128], index: 1, kind: input, shape index: {}]
  %s2 = inlined_call_operand.vmem [shape: f32[2,8,2], index: 2, kind: input, shape index: {}]
  %s3 = inlined_call_operand.vmem [shape: f32[2,128,2], index: 3, kind: input, shape index: {}]
  %s4 = inlined_call_operand.vmem [shape: f32[2,128,128], index: 4, kind: input, shape index: {}]
  %s5 = inlined_call_operand.hbm [shape: f32[2,8,128], index: 5, kind: output, shape index: {}]
  %s6 = sld [smem:[#allocation0]]
  $region61: #{tpu_custom_call.1} parent=0
    _
  %s8 = ssub.s32 1, %s6
  %s9 = scalar_select 0, %s8, %s6
  %s10 = sshll.u32 %s0, 4
  %s11 = int_to_ptr.vmem [resolvable:$true] %s10
  %13 = dma.vmem_to_smem %s11, 16, [#allocation5], [#allocation4]
  %14 = dma.done [#allocation4], 16
  %15 = sfence
  $region1: #{tpu_custom_call.1} parent=0
    #allocation6 [shape = 'u8[8192]{0}', space=vmem, size = 0x2000, scoped, tag = 'output window, operand 0']
    #allocation7 [shape = 's32[2]{0}', space=sflag, size = 0x8, scoped, tag = 'scoped memory for tpu_custom_call.1']
    %16 = vsyncpa [#allocation7], 0
    %s17 = scalar_lea.sflag [#allocation7], 1
    %18 = vsyncpa %s17, 0
    loop: start=0, step=1, limit=4
    $region2: #{tpu_custom_call.1} parent=1 // loop_pre_header
      _
    $region3: #{tpu_custom_call.1} parent=1 // loop_header
      %s20 = sphi 0, %s24
      %p21 = scmp.ge.s32.totalorder %s20, 4
      %s27 = sphi 0, %s46
      %s28 = sphi 0, %s42
      %s29 = sphi 0, %s38
      %s30 = sphi 0, %s27
      %s31 = sphi 0, %s28
      %s32 = sphi 0, %s29
      %s33 = sphi 0, %s30
      %s34 = sphi 0, %s31
      %s35 = sphi 0, %s32
      %s49 = sphi 0, %s51
      %s52 = sphi 0, %s49
      %s53 = sphi 0, %s52
      %s69 = sphi 0, %s53
      %s77 = sphi 0, %s79
      %s80 = sphi 0, %s77
      %s81 = sphi 0, %s80
      %s97 = sphi 0, %s81
      %s111 = sphi 0, %s113
      %s114 = sphi 0, %s111
      %s115 = sphi 0, %s114
      %s131 = sphi 0, %s115
      %s145 = sphi 0, %s147
      %s148 = sphi 0, %s145
      %s149 = sphi 0, %s148
      %s165 = sphi 0, %s149
      %s173 = sphi 0, %s175
      %s176 = sphi 0, %s173
      %s177 = sphi 0, %s176
      %s193 = sphi 0, %s177
    $region4: #{tpu_custom_call.1} parent=1 // loop_header_branch
      %23 = sbr.rel (%p21) target = $region8
    $region5: #{tpu_custom_call.1} parent=1 // loop_body
      %s25 = ssub.s32 %s20, 1
      %s26 = ssub.s32 %s20, 2
      %s36 = sadd.s32 1, %s29
      %p37 = scmp.ge.s32.totalorder %s36, 1
      %s38 = scalar_select %p37, 0, %s36
      %s39 = sadd.s32 1, %s28
      %s40 = scalar_select %p37, %s39, %s28
      %p41 = scmp.ge.s32.totalorder %s40, 1
      %s42 = scalar_select %p41, 0, %s40
      %s43 = sadd.s32 1, %s27
      %s44 = scalar_select %p41, %s43, %s27
      %p45 = scmp.ge.s32.totalorder %s44, 2
      %s46 = scalar_select %p45, 0, %s44
      %s47 = ssub.s32 %s27, %s46
      %p48 = scmp.eq.s32.totalorder %s47, 0
      %s50 = sadd.s32 %s49, 1
      %s51 = scalar_select %p48, %s49, %s50
      %p54 = pneg %p48
      %p55 = scmp.eq.s32.totalorder %s20, 1
      %p56 = por %p54, %p55
      %p57 = scmp.ne.s32.totalorder %s49, %s52
      %p58 = scmp.eq.s32.totalorder %s20, 0
      %p59 = por %p57, %p58
      %p60 = scmp.ne.s32.totalorder %s49, %s52
      %p61 = scmp.eq.s32.totalorder %s25, 1
      %p62 = por %p60, %p61
      %p63 = scmp.ne.s32.totalorder %s52, %s53
      %p64 = scmp.eq.s32.totalorder %s25, 0
      %p65 = por %p63, %p64
      %p66 = scmp.ne.s32.totalorder %s52, %s53
      %p67 = scmp.eq.s32.totalorder %s26, 1
      %p68 = por %p66, %p67
      %p70 = scmp.ne.s32.totalorder %s53, %s69
      %p71 = scmp.eq.s32.totalorder %s26, 0
      %p72 = por %p70, %p71
      %s73 = ssub.s32 %s27, %s46
      %s74 = ssub.s32 %s28, %s42
      %s75 = sor.u32 %s73, %s74
      %p76 = scmp.eq.s32.totalorder %s75, 0
      %s78 = sadd.s32 %s77, 1
      %s79 = scalar_select %p76, %s77, %s78
      %p82 = pneg %p76
      %p83 = scmp.eq.s32.totalorder %s20, 1
      %p84 = por %p82, %p83
      %p85 = scmp.ne.s32.totalorder %s77, %s80
      %p86 = scmp.eq.s32.totalorder %s20, 0
      %p87 = por %p85, %p86
      %p88 = scmp.ne.s32.totalorder %s77, %s80
      %p89 = scmp.eq.s32.totalorder %s25, 1
      %p90 = por %p88, %p89
      %p91 = scmp.ne.s32.totalorder %s80, %s81
      %p92 = scmp.eq.s32.totalorder %s25, 0
      %p93 = por %p91, %p92
      %p94 = scmp.ne.s32.totalorder %s80, %s81
      %p95 = scmp.eq.s32.totalorder %s26, 1
      %p96 = por %p94, %p95
      %p98 = scmp.ne.s32.totalorder %s81, %s97
      %p99 = scmp.eq.s32.totalorder %s26, 0
      %p100 = por %p98, %p99
      %s101 = sld [smem:[#allocation5 + %s27]]
      %p102 = scmp.lt.s32.totalorder %s29, %s101
      %s103 = scalar_select %p102, %s29, %s101
      %s104 = sld [smem:[#allocation5 + %s46]]
      %p105 = scmp.lt.s32.totalorder %s38, %s104
      %s106 = scalar_select %p105, %s38, %s104
      %s107 = ssub.s32 %s27, %s46
      %s108 = ssub.s32 %s103, %s106
      %s109 = sor.u32 %s107, %s108
      %p110 = scmp.eq.s32.totalorder %s109, 0
      %s112 = sadd.s32 %s111, 1
      %s113 = scalar_select %p110, %s111, %s112
      %p116 = pneg %p110
      %p117 = scmp.eq.s32.totalorder %s20, 1
      %p118 = por %p116, %p117
      %p119 = scmp.ne.s32.totalorder %s111, %s114
      %p120 = scmp.eq.s32.totalorder %s20, 0
      %p121 = por %p119, %p120
      %p122 = scmp.ne.s32.totalorder %s111, %s114
      %p123 = scmp.eq.s32.totalorder %s25, 1
      %p124 = por %p122, %p123
      %p125 = scmp.ne.s32.totalorder %s114, %s115
      %p126 = scmp.eq.s32.totalorder %s25, 0
      %p127 = por %p125, %p126
      %p128 = scmp.ne.s32.totalorder %s114, %s115
      %p129 = scmp.eq.s32.totalorder %s26, 1
      %p130 = por %p128, %p129
      %p132 = scmp.ne.s32.totalorder %s115, %s131
      %p133 = scmp.eq.s32.totalorder %s26, 0
      %p134 = por %p132, %p133
      %s135 = sld [smem:[#allocation5 + %s27]]
      %p136 = scmp.lt.s32.totalorder %s29, %s135
      %s137 = scalar_select %p136, %s29, %s135
      %s138 = sld [smem:[#allocation5 + %s46]]
      %p139 = scmp.lt.s32.totalorder %s38, %s138
      %s140 = scalar_select %p139, %s38, %s138
      %s141 = ssub.s32 %s27, %s46
      %s142 = ssub.s32 %s137, %s140
      %s143 = sor.u32 %s141, %s142
      %p144 = scmp.eq.s32.totalorder %s143, 0
      %s146 = sadd.s32 %s145, 1
      %s147 = scalar_select %p144, %s145, %s146
      %p150 = pneg %p144
      %p151 = scmp.eq.s32.totalorder %s20, 1
      %p152 = por %p150, %p151
      %p153 = scmp.ne.s32.totalorder %s145, %s148
      %p154 = scmp.eq.s32.totalorder %s20, 0
      %p155 = por %p153, %p154
      %p156 = scmp.ne.s32.totalorder %s145, %s148
      %p157 = scmp.eq.s32.totalorder %s25, 1
      %p158 = por %p156, %p157
      %p159 = scmp.ne.s32.totalorder %s148, %s149
      %p160 = scmp.eq.s32.totalorder %s25, 0
      %p161 = por %p159, %p160
      %p162 = scmp.ne.s32.totalorder %s148, %s149
      %p163 = scmp.eq.s32.totalorder %s26, 1
      %p164 = por %p162, %p163
      %p166 = scmp.ne.s32.totalorder %s149, %s165
      %p167 = scmp.eq.s32.totalorder %s26, 0
      %p168 = por %p166, %p167
      %s169 = ssub.s32 %s27, %s46
      %s170 = ssub.s32 %s28, %s42
      %s171 = sor.u32 %s169, %s170
      %p172 = scmp.eq.s32.totalorder %s171, 0
      %s174 = sadd.s32 %s173, 1
      %s175 = scalar_select %p172, %s173, %s174
      %p178 = pneg %p172
      %p179 = scmp.eq.s32.totalorder %s20, 1
      %p180 = por %p178, %p179
      %p181 = scmp.ne.s32.totalorder %s173, %s176
      %p182 = scmp.eq.s32.totalorder %s20, 0
      %p183 = por %p181, %p182
      %p184 = scmp.ne.s32.totalorder %s173, %s176
      %p185 = scmp.eq.s32.totalorder %s25, 1
      %p186 = por %p184, %p185
      %p187 = scmp.ne.s32.totalorder %s176, %s177
      %p188 = scmp.eq.s32.totalorder %s25, 0
      %p189 = por %p187, %p188
      %p190 = scmp.ne.s32.totalorder %s176, %s177
      %p191 = scmp.eq.s32.totalorder %s26, 1
      %p192 = por %p190, %p191
      %p194 = scmp.ne.s32.totalorder %s177, %s193
      %p195 = scmp.eq.s32.totalorder %s26, 0
      %p196 = por %p194, %p195
      %p197 = scmp.le.s32.totalorder 1, %s20
      %p198 = scmp.lt.s32.totalorder %s20, 3
      %p199 = pnand %p197, %p198
      %p200 = pneg %p199
      // Predicated region
      $region9: #{tpu_custom_call.1} parent=5 // pred_check
        _
      $region10: #{tpu_custom_call.1} parent=5 // pred_check_branch
        %202 = sbr.rel (%p199) target = $region12
      $region11: #{tpu_custom_call.1} parent=5 // pred_region
        %s203 = ssub.s32 %s20, 1
      $region12: #{tpu_custom_call.1} parent=5 // pred_fallthru
        _
      %p204 = scmp.lt.s32.totalorder %s20, 2
      // Predicated region
      $region13: #{tpu_custom_call.1} parent=5 // pred_check
        %p205 = pneg %p204
      $region14: #{tpu_custom_call.1} parent=5 // pred_check_branch
        %207 = sbr.rel (%p205) target = $region16
      $region15: #{tpu_custom_call.1} parent=5 // pred_region
        // Predicated region
        $region17: #{tpu_custom_call.1} parent=15 // pred_check
          %p208 = pneg %p59
        $region18: #{tpu_custom_call.1} parent=15 // pred_check_branch
          %210 = sbr.rel (%p208) target = $region20
        $region19: #{tpu_custom_call.1} parent=15 // pred_region
          %p211 = scmp.lt.s32.totalorder %s27, 1
          %s212 = scalar_select %p211, %s27, 1
          %s213 = scalar_lea.vmem %s1, %s212
        $region20: #{tpu_custom_call.1} parent=15 // pred_fallthru
          _
        // Predicated region
        $region21: #{tpu_custom_call.1} parent=15 // pred_check
          %p214 = pneg %p87
        $region22: #{tpu_custom_call.1} parent=15 // pred_check_branch
          %216 = sbr.rel (%p214) target = $region24
        $region23: #{tpu_custom_call.1} parent=15 // pred_region
          %p217 = scmp.lt.s32.totalorder %s27, 1
          %s218 = scalar_select %p217, %s27, 1
          %p219 = scmp.lt.s32.totalorder %s28, 0
          %s220 = scalar_select %p219, %s28, 0
          %s221 = sadd.s32 %s220, %s218
          %s222 = smul.addr %s221, 8
          %s223 = scalar_lea.vmem %s2, %s222
        $region24: #{tpu_custom_call.1} parent=15 // pred_fallthru
          _
        // Predicated region
        $region25: #{tpu_custom_call.1} parent=15 // pred_check
          %p224 = pneg %p121
        $region26: #{tpu_custom_call.1} parent=15 // pred_check_branch
          %226 = sbr.rel (%p224) target = $region28
        $region27: #{tpu_custom_call.1} parent=15 // pred_region
          %s227 = sld [smem:[#allocation5 + %s27]]
          %p228 = scmp.lt.s32.totalorder %s29, %s227
          %s229 = scalar_select %p228, %s29, %s227
          %s230 = smul.u32 16, %s229
          %p231 = scmp.lt.s32.totalorder %s27, 1
          %s232 = scalar_select %p231, %s27, 1
          %p233 = scmp.lt.s32.totalorder %s230, 15
          %s234 = scalar_select %p233, %s230, 15
          %s235 = smul.addr %s232, 16
          %s236 = sadd.s32 %s234, %s235
          %s237 = smul.addr %s236, 8
          %s238 = scalar_lea.vmem %s3, %s237
          %s239 = sld [smem:[#allocation5 + %s27]]
          %p240 = scmp.lt.s32.totalorder %s29, %s239
          %s241 = scalar_select %p240, %s29, %s239
          %s242 = smul.u32 16, %s241
        $region28: #{tpu_custom_call.1} parent=15 // pred_fallthru
          _
        // Predicated region
        $region29: #{tpu_custom_call.1} parent=15 // pred_check
          %p243 = pneg %p155
        $region30: #{tpu_custom_call.1} parent=15 // pred_check_branch
          %245 = sbr.rel (%p243) target = $region32
        $region31: #{tpu_custom_call.1} parent=15 // pred_region
          %s246 = sld [smem:[#allocation5 + %s27]]
          %p247 = scmp.lt.s32.totalorder %s29, %s246
          %s248 = scalar_select %p247, %s29, %s246
          %s249 = smul.u32 16, %s248
          %p250 = scmp.lt.s32.totalorder %s27, 1
          %s251 = scalar_select %p250, %s27, 1
          %p252 = scmp.lt.s32.totalorder %s249, 15
          %s253 = scalar_select %p252, %s249, 15
          %s254 = smul.addr %s251, 16
          %s255 = sadd.s32 %s253, %s254
          %s256 = smul.addr %s255, 8
          %s257 = scalar_lea.vmem %s4, %s256
          %s258 = sld [smem:[#allocation5 + %s27]]
          %p259 = scmp.lt.s32.totalorder %s29, %s258
          %s260 = scalar_select %p259, %s29, %s258
          %s261 = smul.u32 16, %s260
        $region32: #{tpu_custom_call.1} parent=15 // pred_fallthru
          _
      $region16: #{tpu_custom_call.1} parent=5 // pred_fallthru
        _
      %p262 = scmp.le.s32.totalorder 1, %s20
      %p263 = scmp.lt.s32.totalorder %s20, 3
      %p264 = pnand %p262, %p263
      %p265 = pneg %p264
      // Predicated region
      $region33: #{tpu_custom_call.1} parent=5 // pred_check
        _
      $region34: #{tpu_custom_call.1} parent=5 // pred_check_branch
        %267 = sbr.rel (%p264) target = $region36
      $region35: #{tpu_custom_call.1} parent=5 // pred_region
        %s268 = ssub.s32 %s20, 1
        %p269 = scmp.lt.s32.totalorder %s30, 1
        %s270 = scalar_select %p269, %s30, 1
        %s271 = scalar_lea.vmem %s1, %s270
        %p272 = pneg %p65
        %p273 = pneg %p62
        %p274 = scmp.lt.s32.totalorder %s30, 1
        %s275 = scalar_select %p274, %s30, 1
        %p276 = scmp.lt.s32.totalorder %s31, 0
        %s277 = scalar_select %p276, %s31, 0
        %s278 = sadd.s32 %s277, %s275
        %s279 = smul.addr %s278, 8
        %s280 = scalar_lea.vmem %s2, %s279
        %p281 = pneg %p93
        %p282 = pneg %p90
        %s283 = sld [smem:[#allocation5 + %s30]]
        %p284 = scmp.lt.s32.totalorder %s32, %s283
        %s285 = scalar_select %p284, %s32, %s283
        %s286 = smul.u32 16, %s285
        %p287 = scmp.lt.s32.totalorder %s30, 1
        %s288 = scalar_select %p287, %s30, 1
        %p289 = scmp.lt.s32.totalorder %s286, 15
        %s290 = scalar_select %p289, %s286, 15
        %s291 = smul.addr %s288, 16
        %s292 = sadd.s32 %s290, %s291
        %s293 = smul.addr %s292, 8
        %s294 = scalar_lea.vmem %s3, %s293
        %p295 = pneg %p127
        %p296 = pneg %p124
        %s297 = sld [smem:[#allocation5 + %s30]]
        %p298 = scmp.lt.s32.totalorder %s32, %s297
        %s299 = scalar_select %p298, %s32, %s297
        %s300 = smul.u32 16, %s299
        %p301 = scmp.lt.s32.totalorder %s30, 1
        %s302 = scalar_select %p301, %s30, 1
        %p303 = scmp.lt.s32.totalorder %s300, 15
        %s304 = scalar_select %p303, %s300, 15
        %s305 = smul.addr %s302, 16
        %s306 = sadd.s32 %s304, %s305
        %s307 = smul.addr %s306, 8
        %s308 = scalar_lea.vmem %s4, %s307
        %p309 = pneg %p161
        %p310 = pneg %p158
        %p311 = pneg %p189
        %p312 = pneg %p186
        %s313 = sand.u32 %s176, 1
        %s314 = scalar_lea.sflag [#allocation7], %s313
        %s315 = sand.u32 %s176, 1
        %s316 = smul.addr %s315, 8
        %s317 = scalar_lea.vmem [#allocation6], %s316
        %p318 = scmp.lt.s32.totalorder %s30, 1
        %s319 = scalar_select %p318, %s30, 1
        %s320 = scalar_lea.vmem %s1, %s319
        %p321 = scmp.lt.s32.totalorder %s30, 1
        %s322 = scalar_select %p321, %s30, 1
        %p323 = scmp.lt.s32.totalorder %s31, 0
        %s324 = scalar_select %p323, %s31, 0
        %s325 = sadd.s32 %s324, %s322
        %s326 = smul.addr %s325, 8
        %s327 = scalar_lea.vmem %s2, %s326
        %s328 = sld [smem:[#allocation5 + %s30]]
        %p329 = scmp.lt.s32.totalorder %s32, %s328
        %s330 = scalar_select %p329, %s32, %s328
        %s331 = smul.u32 16, %s330
        %p332 = scmp.lt.s32.totalorder %s30, 1
        %s333 = scalar_select %p332, %s30, 1
        %p334 = scmp.lt.s32.totalorder %s331, 15
        %s335 = scalar_select %p334, %s331, 15
        %s336 = smul.addr %s333, 16
        %s337 = sadd.s32 %s335, %s336
        %s338 = smul.addr %s337, 8
        %s339 = scalar_lea.vmem %s3, %s338
        %s340 = sld [smem:[#allocation5 + %s30]]
        %p341 = scmp.lt.s32.totalorder %s32, %s340
        %s342 = scalar_select %p341, %s32, %s340
        %s343 = smul.u32 16, %s342
        %s344 = sld [smem:[#allocation5 + %s30]]
        %p345 = scmp.lt.s32.totalorder %s32, %s344
        %s346 = scalar_select %p345, %s32, %s344
        %s347 = smul.u32 16, %s346
        %p348 = scmp.lt.s32.totalorder %s30, 1
        %s349 = scalar_select %p348, %s30, 1
        %p350 = scmp.lt.s32.totalorder %s347, 15
        %s351 = scalar_select %p350, %s347, 15
        %s352 = smul.addr %s349, 16
        %s353 = sadd.s32 %s351, %s352
        %s354 = smul.addr %s353, 8
        %s355 = scalar_lea.vmem %s4, %s354
        %s356 = sld [smem:[#allocation5 + %s30]]
        %p357 = scmp.lt.s32.totalorder %s32, %s356
        %s358 = scalar_select %p357, %s32, %s356
        %s359 = smul.u32 16, %s358
        %p360 = scmp.eq.s32.totalorder %s32, 0
        // Predicated region
        $region37: #{tpu_custom_call.1} parent=35 // pred_check
          %p361 = pneg %p360
        $region38: #{tpu_custom_call.1} parent=35 // pred_check_branch
          %363 = sbr.rel (%p361) target = $region40
        $region39: #{tpu_custom_call.1} parent=35 // pred_region
          %vm364 = vcmask 7168
          %365 = vst.msk [vmem:[#allocation2] sm:$0xff] %vm364, -inf
          %366 = vst [vmem:[#allocation3] sm:$0xff] 0.0
        $region40: #{tpu_custom_call.1} parent=35 // pred_fallthru
          _
        %s367 = sld [smem:[#allocation5 + %s30]]
        %p368 = scmp.le.s32.totalorder %s32, %s367
        // Predicated region
        $region41: #{tpu_custom_call.1} parent=35 // pred_check
          %p369 = pneg %p368
        $region42: #{tpu_custom_call.1} parent=35 // pred_check_branch
          %371 = sbr.rel (%p369) target = $region44
        $region43: #{tpu_custom_call.1} parent=35 // pred_region
          %v372 = vld [vmem:[%s327] sm:$0xff]
          %v373 = vld [vmem:[%s339] sm:$0xff]
          %v374 = vld [vmem:[%s339 + $0x8] sm:$0xff]
          %v375 = vld [vmem:[%s339 + $0x10] sm:$0xff]
          %v376 = vld [vmem:[%s339 + $0x18] sm:$0xff]
          %v377 = vld [vmem:[%s339 + $0x20] sm:$0xff]
          %v378 = vld [vmem:[%s339 + $0x28] sm:$0xff]
          %v379 = vld [vmem:[%s339 + $0x30] sm:$0xff]
          %v380 = vld [vmem:[%s339 + $0x38] sm:$0xff]
          %v381 = vld [vmem:[%s339 + $0x40] sm:$0xff]
          %v382 = vld [vmem:[%s339 + $0x48] sm:$0xff]
          %v383 = vld [vmem:[%s339 + $0x50] sm:$0xff]
          %v384 = vld [vmem:[%s339 + $0x58] sm:$0xff]
          %v385 = vld [vmem:[%s339 + $0x60] sm:$0xff]
          %v386 = vld [vmem:[%s339 + $0x68] sm:$0xff]
          %v387 = vld [vmem:[%s339 + $0x70] sm:$0xff]
          %v388 = vld [vmem:[%s339 + $0x78] sm:$0xff]
          %v389 = vld [vmem:[%s355] sm:$0xff]
          %v390 = vld [vmem:[%s355 + $0x8] sm:$0xff]
          %v391 = vld [vmem:[%s355 + $0x10] sm:$0xff]
          %v392 = vld [vmem:[%s355 + $0x18] sm:$0xff]
          %v393 = vld [vmem:[%s355 + $0x20] sm:$0xff]
          %v394 = vld [vmem:[%s355 + $0x28] sm:$0xff]
          %v395 = vld [vmem:[%s355 + $0x30] sm:$0xff]
          %v396 = vld [vmem:[%s355 + $0x38] sm:$0xff]
          %v397 = vld [vmem:[%s355 + $0x40] sm:$0xff]
          %v398 = vld [vmem:[%s355 + $0x48] sm:$0xff]
          %v399 = vld [vmem:[%s355 + $0x50] sm:$0xff]
          %v400 = vld [vmem:[%s355 + $0x58] sm:$0xff]
          %v401 = vld [vmem:[%s355 + $0x60] sm:$0xff]
          %v402 = vld [vmem:[%s355 + $0x68] sm:$0xff]
          %v403 = vld [vmem:[%s355 + $0x70] sm:$0xff]
          %v404 = vld [vmem:[%s355 + $0x78] sm:$0xff]
          %v405 = vld [vmem:[%s320] sm:$0x1]
          %vm406 = vcmask 15360
          %v408 = vsel %vm406, %v372, 0
          %v411 = vsel %vm406, %v373, 0
          %v414 = vsel %vm406, %v374, 0
          %v417 = vsel %vm406, %v375, 0
          %v420 = vsel %vm406, %v376, 0
          %v423 = vsel %vm406, %v377, 0
          %v426 = vsel %vm406, %v378, 0
          %v429 = vsel %vm406, %v379, 0
          %v432 = vsel %vm406, %v380, 0
          %v435 = vsel %vm406, %v381, 0
          %v438 = vsel %vm406, %v382, 0
          %v441 = vsel %vm406, %v383, 0
          %v444 = vsel %vm406, %v384, 0
          %v447 = vsel %vm406, %v385, 0
          %v450 = vsel %vm406, %v386, 0
          %v453 = vsel %vm406, %v387, 0
          %v456 = vsel %vm406, %v388, 0
          %458 = vmatprep.subr.mxu0 0.0
          %459 = vmatpush1.xpose.msra.mxu0 %v456
          %460 = vmatprep.subr.mxu0 0.0
          %461 = vmatpush1.xpose.msra.mxu0 %v453
          %462 = vmatprep.subr.mxu0 0.0
          %463 = vmatpush1.xpose.msra.mxu0 %v450
          %464 = vmatprep.subr.mxu0 0.0
          %465 = vmatpush1.xpose.msra.mxu0 %v447
          %466 = vmatprep.subr.mxu0 0.0
          %467 = vmatpush1.xpose.msra.mxu0 %v444
          %468 = vmatprep.subr.mxu0 0.0
          %469 = vmatpush1.xpose.msra.mxu0 %v441
          %470 = vmatprep.subr.mxu0 0.0
          %471 = vmatpush1.xpose.msra.mxu0 %v438
          %472 = vmatprep.subr.mxu0 0.0
          %473 = vmatpush1.xpose.msra.mxu0 %v435
          %474 = vmatprep.subr.mxu0 0.0
          %475 = vmatpush1.xpose.msra.mxu0 %v432
          %476 = vmatprep.subr.mxu0 0.0
          %477 = vmatpush1.xpose.msra.mxu0 %v429
          %478 = vmatprep.subr.mxu0 0.0
          %479 = vmatpush1.xpose.msra.mxu0 %v426
          %480 = vmatprep.subr.mxu0 0.0
          %481 = vmatpush1.xpose.msra.mxu0 %v423
          %482 = vmatprep.subr.mxu0 0.0
          %483 = vmatpush1.xpose.msra.mxu0 %v420
          %484 = vmatprep.subr.mxu0 0.0
          %485 = vmatpush1.xpose.msra.mxu0 %v417
          %486 = vmatprep.subr.mxu0 0.0
          %487 = vmatpush1.xpose.msra.mxu0 %v414
          %488 = vmatprep.subr.mxu0 0.0
          %489 = vmatpush1.xpose.msra.mxu0 %v411
          %490 = vmatprep.subr.mxu0 0.0
          %491 = vmatpush2.xpose.msra.mxu0 0.0
          %492 = vmatprep.subr.mxu0 0.0
          %493 = vmatpush2.xpose.msra.mxu0 0.0
          %494 = vmatprep.subr.mxu0 0.0
          %495 = vmatpush2.xpose.msra.mxu0 0.0
          %496 = vmatprep.subr.mxu0 0.0
          %497 = vmatpush2.xpose.msra.mxu0 0.0
          %498 = vmatprep.subr.mxu0 0.0
          %499 = vmatpush2.xpose.msra.mxu0 0.0
          %500 = vmatprep.subr.mxu0 0.0
          %501 = vmatpush2.xpose.msra.mxu0 0.0
          %502 = vmatprep.subr.mxu0 0.0
          %503 = vmatpush2.xpose.msra.mxu0 0.0
          %504 = vmatprep.subr.mxu0 0.0
          %505 = vmatpush2.xpose.msra.mxu0 0.0
          %506 = vmatprep.subr.mxu0 0.0
          %507 = vmatpush2.xpose.msra.mxu0 0.0
          %508 = vmatprep.subr.mxu0 0.0
          %509 = vmatpush2.xpose.msra.mxu0 0.0
          %510 = vmatprep.subr.mxu0 0.0
          %511 = vmatpush2.xpose.msra.mxu0 0.0
          %512 = vmatprep.subr.mxu0 0.0
          %513 = vmatpush2.xpose.msra.mxu0 0.0
          %514 = vmatprep.subr.mxu0 0.0
          %515 = vmatpush2.xpose.msra.mxu0 0.0
          %516 = vmatprep.subr.mxu0 0.0
          %517 = vmatpush2.xpose.msra.mxu0 0.0
          %518 = vmatprep.subr.mxu0 0.0
          %519 = vmatpush2.xpose.msra.mxu0 0.0
          %520 = vmatprep.subr.mxu0 0.0
          %521 = vmatpush2.xpose.msra.mxu0 0.0
          %522 = vmatprep.mubr.f32.mxu0 0.0
          %523 = vmatmul.mubr.f32.gmra.mxu0 %v408
          %v524 = vpop.f32.mrf.mxu0
          %v525 = vadd.f32 0.0, %v524
          %v526 = vpop.f32.mrf.mxu0
          %527 = vdwg.mxu0
          %v528 = vmul.f32 %v525, 0.70710677
          %s529 = smul.u32 %s32, 128
          %v530 = vlaneseq
          %v531 = vand.u32 %v530, 127
          %v532 = vstv %s529
          %v533 = vadd.s32 %v532, %v531
          %v534 = vlaneseq
          %v535 = vshrl.u32 %v534, 7
          %v536 = vsub.s32 0, %v535
          %v537 = vrot.slane %v405, %v536
          %538 = vset.pattern.permute.xlu0 0
          %539 = vperm.xlu0 %538, %v537
          %v540 = vpop.permute.xlu0 %539
          %vm541 = vcmp.lt.s32.totalorder %v533, %v540
          %v542 = vsel %vm541, %v528, -1000000.0
          %v543 = vld [vmem:[#allocation2] sm:$0xff]
          %544 = vmax.xlane.f32.xlu0 %v542
          %v545 = vpop.xlane.xlu0 %544
          %v546 = vmax.f32 %v543, %v545
          %v547 = vsub.f32 %v543, %v546
          %v548 = vmul.f32 %v547, 1.442695
          %v549 = vpow.pop %v548
          %551 = vset.pattern.permute.xlu0 0
          %552 = vperm.xlu0 %551, %v546
          %v553 = vpop.permute.xlu0 %552
          %v555 = vsub.f32 %v542, %v553
          %v556 = vmul.f32 %v555, 1.442695
          %v557 = vpow.pop %v556
          %v558 = vld [vmem:[#allocation3] sm:$0xff]
          %560 = vset.pattern.permute.xlu0 0
          %561 = vperm.xlu0 %560, %v549
          %v562 = vpop.permute.xlu0 %561
          %v564 = vmul.f32 %v562, %v558
          %565 = vmatprep.subr.mxu0 0.0
          %566 = vmatpush1.msra.mxu0 %v404
          %567 = vmatprep.subr.mxu0 0.0
          %568 = vmatpush1.msra.mxu0 %v403
          %569 = vmatprep.subr.mxu0 0.0
          %570 = vmatpush1.msra.mxu0 %v402
          %571 = vmatprep.subr.mxu0 0.0
          %572 = vmatpush1.msra.mxu0 %v401
          %573 = vmatprep.subr.mxu0 0.0
          %574 = vmatpush1.msra.mxu0 %v400
          %575 = vmatprep.subr.mxu0 0.0
          %576 = vmatpush1.msra.mxu0 %v399
          %577 = vmatprep.subr.mxu0 0.0
          %578 = vmatpush1.msra.mxu0 %v398
          %579 = vmatprep.subr.mxu0 0.0
          %580 = vmatpush1.msra.mxu0 %v397
          %581 = vmatprep.subr.mxu0 0.0
          %582 = vmatpush1.msra.mxu0 %v396
          %583 = vmatprep.subr.mxu0 0.0
          %584 = vmatpush1.msra.mxu0 %v395
          %585 = vmatprep.subr.mxu0 0.0
          %586 = vmatpush1.msra.mxu0 %v394
          %587 = vmatprep.subr.mxu0 0.0
          %588 = vmatpush1.msra.mxu0 %v393
          %589 = vmatprep.subr.mxu0 0.0
          %590 = vmatpush1.msra.mxu0 %v392
          %591 = vmatprep.subr.mxu0 0.0
          %592 = vmatpush1.msra.mxu0 %v391
          %593 = vmatprep.subr.mxu0 0.0
          %594 = vmatpush1.msra.mxu0 %v390
          %595 = vmatprep.subr.mxu0 0.0
          %596 = vmatpush1.msra.mxu0 %v389
          %597 = vmatprep.subr.mxu0 0.0
          %598 = vmatpush2.msra.mxu0 0.0
          %599 = vmatprep.subr.mxu0 0.0
          %600 = vmatpush2.msra.mxu0 0.0
          %601 = vmatprep.subr.mxu0 0.0
          %602 = vmatpush2.msra.mxu0 0.0
          %603 = vmatprep.subr.mxu0 0.0
          %604 = vmatpush2.msra.mxu0 0.0
          %605 = vmatprep.subr.mxu0 0.0
          %606 = vmatpush2.msra.mxu0 0.0
          %607 = vmatprep.subr.mxu0 0.0
          %608 = vmatpush2.msra.mxu0 0.0
          %609 = vmatprep.subr.mxu0 0.0
          %610 = vmatpush2.msra.mxu0 0.0
          %611 = vmatprep.subr.mxu0 0.0
          %612 = vmatpush2.msra.mxu0 0.0
          %613 = vmatprep.subr.mxu0 0.0
          %614 = vmatpush2.msra.mxu0 0.0
          %615 = vmatprep.subr.mxu0 0.0
          %616 = vmatpush2.msra.mxu0 0.0
          %617 = vmatprep.subr.mxu0 0.0
          %618 = vmatpush2.msra.mxu0 0.0
          %619 = vmatprep.subr.mxu0 0.0
          %620 = vmatpush2.msra.mxu0 0.0
          %621 = vmatprep.subr.mxu0 0.0
          %622 = vmatpush2.msra.mxu0 0.0
          %623 = vmatprep.subr.mxu0 0.0
          %624 = vmatpush2.msra.mxu0 0.0
          %625 = vmatprep.subr.mxu0 0.0
          %626 = vmatpush2.msra.mxu0 0.0
          %627 = vmatprep.subr.mxu0 0.0
          %628 = vmatpush2.msra.mxu0 0.0
          %629 = vmatprep.mubr.f32.mxu0 0.0
          %630 = vmatmul.mubr.f32.gmra.mxu0 %v557
          %v631 = vpop.f32.mrf.mxu0
          %v632 = vadd.f32 0.0, %v631
          %v633 = vpop.f32.mrf.mxu0
          %634 = vdwg.mxu0
          %v635 = vadd.f32 %v564, %v632
          %636 = vst [vmem:[#allocation3] sm:$0xff] %v635
          %vm637 = vcmask 7168
          %638 = vst.msk [vmem:[#allocation2] sm:$0xff] %vm637, %v546
        $region44: #{tpu_custom_call.1} parent=35 // pred_fallthru
          _
        // Predicated region
        $region45: #{tpu_custom_call.1} parent=35 // pred_check
          %p639 = pneg %p360
        $region46: #{tpu_custom_call.1} parent=35 // pred_check_branch
          %641 = sbr.rel (%p639) target = $region48
        $region47: #{tpu_custom_call.1} parent=35 // pred_region
          %v642 = vld [vmem:[#allocation3] sm:$0xff]
          %644 = vset.pattern.permute.xlu0 4
          %645 = vperm.xlu0 %644, %v642
          %v646 = vpop.permute.xlu0 %645
          %v648 = vrcp.pop %v646
          %v649 = vmul.f32 %v642, %v648
          %650 = vst [vmem:[%s317] sm:$0xff] %v649
        $region48: #{tpu_custom_call.1} parent=35 // pred_fallthru
          _
        %s651 = sand.u32 %s176, 1
        %s652 = scalar_lea.sflag [#allocation7], %s651
        %s653 = sand.u32 %s176, 1
        %s654 = smul.addr %s653, 8
        %s655 = scalar_lea.vmem [#allocation6], %s654
        // Predicated region
        $region49: #{tpu_custom_call.1} parent=35 // pred_check
          %p656 = pneg %p186
        $region50: #{tpu_custom_call.1} parent=35 // pred_check_branch
          %658 = sbr.rel (%p656) target = $region52
        $region51: #{tpu_custom_call.1} parent=35 // pred_region
          %s660 = ssub.s32 128, 128
          %661 = vsyncadd %s652, %s660
          %s662 = sadd.s32 %s31, %s30
          %s663 = smul.addr %s662, 128
          %s664 = scalar_lea.hbm %s5, %s663
          %s666 = sshll.u32 %s655, 4
          %s667 = int_to_ptr.vmem [resolvable:$true] %s666
          %669 = dma.vmem_to_hbm [thread:$0]  %s667, 128, %s664, %s652
        $region52: #{tpu_custom_call.1} parent=35 // pred_fallthru
          _
      $region36: #{tpu_custom_call.1} parent=5 // pred_fallthru
        _
      %p670 = scmp.le.s32.totalorder 2, %s20
      // Predicated region
      $region53: #{tpu_custom_call.1} parent=5 // pred_check
        %p671 = pneg %p670
      $region54: #{tpu_custom_call.1} parent=5 // pred_check_branch
        %673 = sbr.rel (%p671) target = $region56
      $region55: #{tpu_custom_call.1} parent=5 // pred_region
        %s674 = ssub.s32 %s20, 2
        // Predicated region
        $region57: #{tpu_custom_call.1} parent=55 // pred_check
          %p675 = pneg %p192
        $region58: #{tpu_custom_call.1} parent=55 // pred_check_branch
          %677 = sbr.rel (%p675) target = $region60
        $region59: #{tpu_custom_call.1} parent=55 // pred_region
          %s678 = sand.u32 %s177, 1
          %s679 = scalar_lea.sflag [#allocation7], %s678
          %s680 = sand.u32 %s177, 1
          %s681 = smul.addr %s680, 8
          %s682 = scalar_lea.vmem [#allocation6], %s681
          %683 = dma.done %s679, 128
        $region60: #{tpu_custom_call.1} parent=55 // pred_fallthru
          _
      $region56: #{tpu_custom_call.1} parent=5 // pred_fallthru
        _
    $region6: #{tpu_custom_call.1} parent=1 // loop_footer
      %s24 = sadd.s32 1, %s20
    $region7: #{tpu_custom_call.1} parent=1 // loop_footer_branch
      %19 = sbr.rel target = $region3
    $region8: #{tpu_custom_call.1} parent=1 // loop_exit
      _
    %684 = vsyncpa [#allocation7], 1
    %s685 = scalar_lea.sflag [#allocation7], 1
    %686 = vsyncpa %s685, 1

</llo_original>
